<compile_context>
chip_gen: v7x
topology: tpu7x:2x2x1
jax: 0.10.0
libtpu: 0.0.40
codegen_flags: <defaults>
</compile_context>

<pallas_src>
import functools

import jax
import jax.numpy as jnp
from jax.experimental import pallas as pl
from jax.experimental.pallas import tpu as pltpu


def _mse_sum_kernel(recon_ref, x_ref, out_ref, *, n_inner, tile_rows,
                    total_rows):
    """Accumulate sum((recon - x)^2) over streamed (tile_rows, lanes) blocks.

    Grid is (num_splits, n_inner). The reduction axis `i` is the LAST grid
    axis (iterates innermost), which is what makes the i==0 re-init of the
    resident per-split output block correct; do not reorder the grid.
    """
    c = pl.program_id(0)          # per-TensorCore split (CORE_PARALLEL on v7x)
    i = pl.program_id(1)          # serial sweep over row tiles

    @pl.when(i == 0)
    def _init():
        out_ref[...] = jnp.zeros_like(out_ref)

    # Steady state: pure vld + VPU work; f32 upcast happens in-register so
    # bf16 inputs move half the HBM bytes.
    diff = recon_ref[...].astype(jnp.float32) - x_ref[...].astype(jnp.float32)
    sq = diff * diff                                     # (tile_rows, lanes)

    blk_start = (c * n_inner + i) * tile_rows            # UNclamped row offset
    needs_mask = blk_start + tile_rows > total_rows

    @pl.when(jnp.logical_not(needs_mask))
    def _accumulate_full():
        out_ref[0:1, 0:1, :] += jnp.sum(sq, axis=0, keepdims=True)[None]

    @pl.when(needs_mask)
    def _accumulate_edge():
        # Last (partial) row tile, or a duplicated tail step from an odd
        # 2-way split: Pallas leaves out-of-range rows of the VMEM block
        # undefined, so zero their contribution before accumulating.
        row_ids = jax.lax.broadcasted_iota(jnp.int32, sq.shape, 0)
        valid = (blk_start + row_ids) < total_rows
        out_ref[0:1, 0:1, :] += jnp.sum(jnp.where(valid, sq, 0.0),
                                        axis=0, keepdims=True)[None]


def _generation_config():
    """Returns (per-input tile bytes, vmem_limit_bytes, wanted core splits)."""
    try:
        kind = jax.devices()[0].device_kind.lower()
    except Exception:
        kind = ""
    mib = 1024 * 1024
    if "v7" in kind:
        # 64 MiB VMEM/TC, 2 TensorCores: 4 MiB/input block -> 2 inputs x 2
        # pipeline buffers = 16 MiB/TC; each core step moves >= 8 MiB of HBM.
        return 4 * mib, 48 * mib, 2
    if "v6" in kind:
        # Single TC, 128 MiB physical VMEM: wide blocks amortize per-step cost.
        return 8 * mib, 64 * mib, 1
    # v5e and unknown parts: conservative blocks; the explicit vmem limit
    # matters on v5e where the scoped default is only 16 MiB.
    return 4 * mib, 32 * mib, 1


def beta_vae_loss(recon_x, x, mu, logvar, beta=3.0):
    """Pallas implementation of BetaVAELoss.forward."""
    assert recon_x.shape == x.shape
    batch = x.shape[0]

    tile_bytes, vmem_limit, want_splits = _generation_config()

    # ---- Lane-dense [rows, lanes] view (a free reshape for contiguous
    # inputs). Streaming axis on sublanes, 128-multiple on lanes: full vreg
    # occupancy independent of batch size, fully contiguous DMAs.
    r1 = recon_x.reshape(-1)
    x1 = x.reshape(-1)
    n = r1.shape[0]
    if n % 128 != 0:
        # Rare fallback for sizes not divisible by 128 (this copies).
        # TODO(synk): mask the sub-128 tail in-kernel to avoid the copy.
        pad = 128 - n % 128
        r1 = jnp.pad(r1, (0, pad))
        x1 = jnp.pad(x1, (0, pad))
        n += pad
    lanes = 128
    for cand in (1024, 512, 256):
        if n % cand == 0:
            lanes = cand
            break
    rows = n // lanes
    r2 = r1.reshape(rows, lanes)
    x2 = x1.reshape(rows, lanes)

    # ---- Row-tile sizing: multiple of 8 sublanes, ~tile_bytes per input so
    # 2 inputs x 2 pipeline buffers stay inside the scoped VMEM budget while
    # amortizing the ~0.35 us per-step overhead.
    itemsize = max(r2.dtype.itemsize, x2.dtype.itemsize)
    target_tr = max(8, (tile_bytes // (lanes * itemsize)) // 8 * 8)
    if rows <= target_tr:
        tile_rows = rows             # full-dim block (legal even if rows % 8)
        n_tiles = 1
    else:
        tile_rows = target_tr        # multiple of 8; tail tile masked in-kernel
        n_tiles = pl.cdiv(rows, tile_rows)

    # ---- Optional 2-way split of the row sweep across v7x's two TensorCores.
    num_splits = want_splits if (want_splits > 1 and n_tiles >= 2) else 1
    n_inner = pl.cdiv(n_tiles, num_splits)

    def in_index_map(c, i):
        # Clamp so the (rare) tail step of an odd split re-reads the last
        # valid tile instead of issuing an out-of-bounds DMA; the kernel
        # zeroes its contribution via the unclamped row offset.
        return (jnp.minimum(c * n_inner + i, n_tiles - 1), 0)

    kernel = functools.partial(_mse_sum_kernel, n_inner=n_inner,
                               tile_rows=tile_rows, total_rows=rows)

    if num_splits > 1:
        dims = (pltpu.CORE_PARALLEL, pltpu.ARBITRARY)
    else:
        dims = (pltpu.ARBITRARY, pltpu.ARBITRARY)

    cost = pl.CostEstimate(
        flops=3 * n,
        transcendentals=0,
        bytes_accessed=r2.nbytes + x2.nbytes + num_splits * 8 * lanes * 4,
    )

    partials = pl.pallas_call(
        kernel,
        out_shape=jax.ShapeDtypeStruct((num_splits, 8, lanes), jnp.float32),
        grid=(num_splits, n_inner),
        in_specs=[
            pl.BlockSpec((tile_rows, lanes), in_index_map),   # recon_x
            pl.BlockSpec((tile_rows, lanes), in_index_map),   # x
        ],
        out_specs=pl.BlockSpec((1, 8, lanes), lambda c, i: (c, 0, 0)),
        compiler_params=pltpu.CompilerParams(
            dimension_semantics=dims,
            vmem_limit_bytes=vmem_limit,
        ),
        cost_estimate=cost,
    )(r2, x2)

    recon_sum = jnp.sum(partials)   # only row 0 of each split is non-zero

    # KL on the tiny [batch, latent] tensors: plain jnp, fused by XLA with the
    # final reduction (removes two resident input streams from the pipeline).
    mu32 = mu.astype(jnp.float32)
    lv32 = logvar.astype(jnp.float32)
    kl = -0.5 * jnp.sum(1.0 + lv32 - mu32 * mu32 - jnp.exp(lv32))

    return (recon_sum + beta * kl) / batch


def beta_vae_loss_ref(recon_x, x, mu, logvar, beta=3.0):
    """Pure-JAX reference matching the PyTorch module exactly."""
    recon_loss = jnp.sum((recon_x - x) ** 2)
    kl = -0.5 * jnp.sum(1.0 + logvar - mu ** 2 - jnp.exp(logvar))
    return (recon_loss + beta * kl) / x.shape[0]


if __name__ == "__main__":
    key = jax.random.PRNGKey(0)
    k1, k2, k3, k4 = jax.random.split(key, 4)

    # Small shapes consistent with a VAE forward: batch=2, channels=4,
    # spatial=16x16, latent=32.
    B, C, H, W = 2, 4, 16, 16
    LATENT = 32

    x = jax.random.normal(k1, (B, C, H, W), dtype=jnp.float32)
    recon_x = x + 0.1 * jax.random.normal(k2, (B, C, H, W), dtype=jnp.float32)
    mu = 0.5 * jax.random.normal(k3, (B, LATENT), dtype=jnp.float32)
    logvar = 0.1 * jax.random.normal(k4, (B, LATENT), dtype=jnp.float32)

    beta = 3.0
    out = beta_vae_loss(recon_x, x, mu, logvar, beta=beta)
    out = jax.block_until_ready(out)

    ref = beta_vae_loss_ref(recon_x, x, mu, logvar, beta=beta)
    assert jnp.allclose(out, ref, rtol=1e-5, atol=1e-5), (out, ref)

    print("KERNEL_OK")
</pallas_src>

<mosaic_0001>
module attributes {stable_mosaic.version = 11 : i64} {
  func.func @_mse_sum_kernel(%arg0: i32, %arg1: i32, %arg2: memref<2x1024xf32, #tpu.memory_space<vmem>>, %arg3: memref<2x1024xf32, #tpu.memory_space<vmem>>, %arg4: memref<1x8x1024xf32, #tpu.memory_space<vmem>>) attributes {dimension_semantics = [#tpu.dimension_semantics<arbitrary>, #tpu.dimension_semantics<arbitrary>], iteration_bounds = array<i64: 1, 1>, scalar_prefetch = 0 : i64, scratch_operands = 0 : i64, tpu.core_type = #tpu.core_type<tc>, window_params = [{transform_indices = @transform_0, window_bounds = array<i64: 2, 1024>}, {transform_indices = @transform_1, window_bounds = array<i64: 2, 1024>}, {transform_indices = @transform_2, window_bounds = array<i64: 1, 8, 1024>}]} {
    %c0_i32 = arith.constant 0 : i32
    %0 = arith.cmpi eq, %arg1, %c0_i32 : i32
    %1 = arith.extui %0 : i1 to i32
    %c0_i32_0 = arith.constant 0 : i32
    %2 = arith.cmpi ne, %1, %c0_i32_0 : i32
    scf.if %2 {
      %cst = arith.constant 0.000000e+00 : f32
      %17 = vector.broadcast %cst : f32 to vector<1x8x1024xf32>
      %c0_8 = arith.constant 0 : index
      %c0_9 = arith.constant 0 : index
      %c0_10 = arith.constant 0 : index
      %18 = vector.load %arg4[%c0_8, %c0_9, %c0_10] : memref<1x8x1024xf32, #tpu.memory_space<vmem>>, vector<1x8x1024xf32>
      tpu.vector_store %arg4[%c0_8, %c0_9, %c0_10], %17 {strides = array<i32>} : memref<1x8x1024xf32, #tpu.memory_space<vmem>>, vector<1x8x1024xf32>,
    } else {
    }
    %c0 = arith.constant 0 : index
    %c0_1 = arith.constant 0 : index
    %3 = vector.load %arg2[%c0, %c0_1] : memref<2x1024xf32, #tpu.memory_space<vmem>>, vector<2x1024xf32>
    %c0_2 = arith.constant 0 : index
    %c0_3 = arith.constant 0 : index
    %4 = vector.load %arg3[%c0_2, %c0_3] : memref<2x1024xf32, #tpu.memory_space<vmem>>, vector<2x1024xf32>
    %5 = arith.subf %3, %4 : vector<2x1024xf32>
    %6 = arith.mulf %5, %5 : vector<2x1024xf32>
    %c1_i32 = arith.constant 1 : i32
    %7 = arith.muli %arg0, %c1_i32 : i32
    %8 = arith.addi %7, %arg1 : i32
    %c2_i32 = arith.constant 2 : i32
    %9 = arith.muli %8, %c2_i32 : i32
    %c2_i32_4 = arith.constant 2 : i32
    %10 = arith.addi %9, %c2_i32_4 : i32
    %c2_i32_5 = arith.constant 2 : i32
    %11 = arith.cmpi sgt, %10, %c2_i32_5 : i32
    %true = arith.constant true
    %12 = arith.xori %11, %true : i1
    %13 = arith.extui %12 : i1 to i32
    %c0_i32_6 = arith.constant 0 : i32
    %14 = arith.cmpi ne, %13, %c0_i32_6 : i32
    scf.if %14 {
      %c0_8 = arith.constant 0 : index
      %c0_9 = arith.constant 0 : index
      %c0_10 = arith.constant 0 : index
      %17 = vector.load %arg4[%c0_8, %c0_9, %c0_10] : memref<1x8x1024xf32, #tpu.memory_space<vmem>>, vector<1x1x1024xf32>
      %cst = arith.constant dense<0.000000e+00> : vector<1024xf32>
      %18 = vector.multi_reduction <add>, %6, %cst [0] : vector<2x1024xf32> to vector<1024xf32>
      %19 = vector.shape_cast %18 : vector<1024xf32> to vector<1x1024xf32>
      %20 = vector.shape_cast %19 : vector<1x1024xf32> to vector<1x1x1024xf32>
      %21 = arith.addf %17, %20 : vector<1x1x1024xf32>
      %c0_11 = arith.constant 0 : index
      %c0_12 = arith.constant 0 : index
      %c0_13 = arith.constant 0 : index
      %22 = vector.load %arg4[%c0_11, %c0_12, %c0_13] : memref<1x8x1024xf32, #tpu.memory_space<vmem>>, vector<1x1x1024xf32>
      tpu.vector_store %arg4[%c0_11, %c0_12, %c0_13], %21 {strides = array<i32>} : memref<1x8x1024xf32, #tpu.memory_space<vmem>>, vector<1x1x1024xf32>,
    } else {
    }
    %15 = arith.extui %11 : i1 to i32
    %c0_i32_7 = arith.constant 0 : i32
    %16 = arith.cmpi ne, %15, %c0_i32_7 : i32
    scf.if %16 {
      %17 = tpu.iota {dimensions = array<i32: 0>} : vector<2x1024xi32>
      %18 = vector.broadcast %9 : i32 to vector<2x1024xi32>
      %19 = arith.addi %18, %17 : vector<2x1024xi32>
      %c2_i32_8 = arith.constant 2 : i32
      %20 = vector.broadcast %c2_i32_8 : i32 to vector<2x1024xi32>
      %21 = arith.cmpi slt, %19, %20 : vector<2x1024xi32>
      %c0_9 = arith.constant 0 : index
      %c0_10 = arith.constant 0 : index
      %c0_11 = arith.constant 0 : index
      %22 = vector.load %arg4[%c0_9, %c0_10, %c0_11] : memref<1x8x1024xf32, #tpu.memory_space<vmem>>, vector<1x1x1024xf32>
      %cst = arith.constant 0.000000e+00 : f32
      %23 = vector.broadcast %cst : f32 to vector<2x1024xf32>
      %24 = arith.select %21, %6, %23 : vector<2x1024xi1>, vector<2x1024xf32>
      %cst_12 = arith.constant dense<0.000000e+00> : vector<1024xf32>
      %25 = vector.multi_reduction <add>, %24, %cst_12 [0] : vector<2x1024xf32> to vector<1024xf32>
      %26 = vector.shape_cast %25 : vector<1024xf32> to vector<1x1024xf32>
      %27 = vector.shape_cast %26 : vector<1x1024xf32> to vector<1x1x1024xf32>
      %28 = arith.addf %22, %27 : vector<1x1x1024xf32>
      %c0_13 = arith.constant 0 : index
      %c0_14 = arith.constant 0 : index
      %c0_15 = arith.constant 0 : index
      %29 = vector.load %arg4[%c0_13, %c0_14, %c0_15] : memref<1x8x1024xf32, #tpu.memory_space<vmem>>, vector<1x1x1024xf32>
      tpu.vector_store %arg4[%c0_13, %c0_14, %c0_15], %28 {strides = array<i32>} : memref<1x8x1024xf32, #tpu.memory_space<vmem>>, vector<1x1x1024xf32>,
    } else {
    }
    return
  }
  func.func @transform_0(%arg0: i32, %arg1: i32) -> (i32, i32) {
    %c1_i32 = arith.constant 1 : i32
    %0 = arith.muli %arg0, %c1_i32 : i32
    %1 = arith.addi %0, %arg1 : i32
    %c0_i32 = arith.constant 0 : i32
    %2 = arith.minsi %1, %c0_i32 : i32
    %c0_i32_0 = arith.constant 0 : i32
    %c0_i32_1 = arith.constant 0 : i32
    return %2, %c0_i32_0 : i32, i32
  }
  func.func @transform_1(%arg0: i32, %arg1: i32) -> (i32, i32) {
    %c1_i32 = arith.constant 1 : i32
    %0 = arith.muli %arg0, %c1_i32 : i32
    %1 = arith.addi %0, %arg1 : i32
    %c0_i32 = arith.constant 0 : i32
    %2 = arith.minsi %1, %c0_i32 : i32
    %c0_i32_0 = arith.constant 0 : i32
    %c0_i32_1 = arith.constant 0 : i32
    return %2, %c0_i32_0 : i32, i32
  }
  func.func @transform_2(%arg0: i32, %arg1: i32) -> (i32, i32, i32) {
    %c0_i32 = arith.constant 0 : i32
    %c0_i32_0 = arith.constant 0 : i32
    %c0_i32_1 = arith.constant 0 : i32
    return %arg0, %c0_i32, %c0_i32_0 : i32, i32, i32
  }
}

</mosaic_0001>

<llo_original>
// kernel: tpu_custom_call.1
$region0: #{tpu_custom_call.1}
  #allocation0 [shape = 'u32[]', space=smem, size = 0x4, offset = 0x4, fixed_abs, tag = 'smem constant byte address 0x4 - core index']
  #allocation1 [shape = 'u32[144,128]{1,0:T(1,128)}', space=vmem, size = 0x12000, scoped, tag = 'internal scratch']
  %s0 = inlined_call_operand.hbm [shape: f32[2,1024], index: 0, kind: input, shape index: {}]
  %s1 = inlined_call_operand.hbm [shape: f32[2,1024], index: 1, kind: input, shape index: {}]
  %s2 = inlined_call_operand.hbm [shape: f32[1,8,1024], index: 2, kind: output, shape index: {}]
  %s3 = sld [smem:[#allocation0]]
  $region38: #{tpu_custom_call.1} parent=0
    _
  %s5 = ssub.s32 1, %s3
  %s6 = scalar_select 0, %s5, %s3
  $region1: #{tpu_custom_call.1} parent=0
    #allocation2 [shape = 'u8[8192]{0}', space=vmem, size = 0x2000, scoped, tag = 'input window, operand 0, single buffered']
    #allocation3 [shape = 's32[1]{0}', space=sflag, size = 0x4, scoped, tag = 'scoped memory for tpu_custom_call.1']
    #allocation4 [shape = 's32[1]{0}', space=sflag, size = 0x4, scoped, tag = 'scoped memory for tpu_custom_call.1']
    #allocation5 [shape = 'u8[8192]{0}', space=vmem, size = 0x2000, scoped, tag = 'input window, operand 1, single buffered']
    #allocation6 [shape = 's32[1]{0}', space=sflag, size = 0x4, scoped, tag = 'scoped memory for tpu_custom_call.1']
    #allocation7 [shape = 'u8[32768]{0}', space=vmem, size = 0x8000, scoped, tag = 'output window, operand 0, single buffered']
    %7 = vsyncpa [#allocation3], 0
    %8 = vsyncpa [#allocation6], 0
    %9 = vsyncpa [#allocation4], 0
    // Predicated region
    $region2: #{tpu_custom_call.1} parent=1 // pred_check
      _
    $region3: #{tpu_custom_call.1} parent=1 // pred_check_branch
      %11 = sbr.rel (0) target = $region5
    $region4: #{tpu_custom_call.1} parent=1 // pred_region
      %s12 = sadd.s32 0, 0
      %p13 = scmp.lt.s32.totalorder %s12, 0
      %s14 = scalar_select %p13, %s12, 0
      %s16 = ssub.s32 256, 256
      %17 = vsyncadd [#allocation3], %s16
      %s18 = smul.addr %s14, 8
      %s19 = smul.addr %s18, 32
      %s20 = scalar_lea.hbm %s0, %s19
      %s22 = sshll.u32 [#allocation2], 4
      %s23 = int_to_ptr.vmem [resolvable:$true] %s22
      %25 = dma.hbm_to_vmem [thread:$0]  %s20, 256, %s23, [#allocation3]
    $region5: #{tpu_custom_call.1} parent=1 // pred_fallthru
      _
    // Predicated region
    $region6: #{tpu_custom_call.1} parent=1 // pred_check
      _
    $region7: #{tpu_custom_call.1} parent=1 // pred_check_branch
      %27 = sbr.rel (0) target = $region9
    $region8: #{tpu_custom_call.1} parent=1 // pred_region
      %s28 = sadd.s32 0, 0
      %p29 = scmp.lt.s32.totalorder %s28, 0
      %s30 = scalar_select %p29, %s28, 0
      %s32 = ssub.s32 256, 256
      %33 = vsyncadd [#allocation6], %s32
      %s34 = smul.addr %s30, 8
      %s35 = smul.addr %s34, 32
      %s36 = scalar_lea.hbm %s1, %s35
      %s38 = sshll.u32 [#allocation5], 4
      %s39 = int_to_ptr.vmem [resolvable:$true] %s38
      %41 = dma.hbm_to_vmem [thread:$0]  %s36, 256, %s39, [#allocation6]
    $region9: #{tpu_custom_call.1} parent=1 // pred_fallthru
      _
    // Predicated region
    $region10: #{tpu_custom_call.1} parent=1 // pred_check
      _
    $region11: #{tpu_custom_call.1} parent=1 // pred_check_branch
      %43 = sbr.rel (0) target = $region13
    $region12: #{tpu_custom_call.1} parent=1 // pred_region
      %44 = dma.done [#allocation3], 256
    $region13: #{tpu_custom_call.1} parent=1 // pred_fallthru
      _
    // Predicated region
    $region14: #{tpu_custom_call.1} parent=1 // pred_check
      _
    $region15: #{tpu_custom_call.1} parent=1 // pred_check_branch
      %46 = sbr.rel (0) target = $region17
    $region16: #{tpu_custom_call.1} parent=1 // pred_region
      %47 = dma.done [#allocation6], 256
    $region17: #{tpu_custom_call.1} parent=1 // pred_fallthru
      _
    %s48 = sadd.s32 0, 0
    %p49 = scmp.lt.s32.totalorder %s48, 0
    %s50 = scalar_select %p49, %s48, 0
    %s51 = sadd.s32 0, 0
    %p52 = scmp.lt.s32.totalorder %s51, 0
    %s53 = scalar_select %p52, %s51, 0
    %p54 = scmp.eq.s32.totalorder 0, 0
    // Predicated region
    $region18: #{tpu_custom_call.1} parent=1 // pred_check
      %p55 = pneg %p54
    $region19: #{tpu_custom_call.1} parent=1 // pred_check_branch
      %57 = sbr.rel (%p55) target = $region21
    $region20: #{tpu_custom_call.1} parent=1 // pred_region
      %58 = vst [vmem:[#allocation7] sm:$0xff] 0.0
      %59 = vst [vmem:[#allocation7 + $0x8] sm:$0xff] 0.0
      %60 = vst [vmem:[#allocation7 + $0x10] sm:$0xff] 0.0
      %61 = vst [vmem:[#allocation7 + $0x18] sm:$0xff] 0.0
      %62 = vst [vmem:[#allocation7 + $0x20] sm:$0xff] 0.0
      %63 = vst [vmem:[#allocation7 + $0x28] sm:$0xff] 0.0
      %64 = vst [vmem:[#allocation7 + $0x30] sm:$0xff] 0.0
      %65 = vst [vmem:[#allocation7 + $0x38] sm:$0xff] 0.0
    $region21: #{tpu_custom_call.1} parent=1 // pred_fallthru
      _
    %v66 = vld [vmem:[#allocation2] sm:$0xff]
    %v67 = vld [vmem:[#allocation2 + $0x8] sm:$0xff]
    %v68 = vld [vmem:[#allocation5] sm:$0xff]
    %v69 = vld [vmem:[#allocation5 + $0x8] sm:$0xff]
    %v70 = vsub.f32 %v66, %v68
    %v71 = vsub.f32 %v67, %v69
    %v72 = vmul.f32 %v70, %v70
    %v73 = vmul.f32 %v71, %v71
    %s74 = sadd.s32 0, 0
    %s75 = smul.u32 %s74, 2
    %s76 = sadd.s32 %s75, 2
    %p77 = scmp.gt.s32.totalorder %s76, 2
    %p78 = scmp.le.s32.totalorder %s76, 2
    // Predicated region
    $region22: #{tpu_custom_call.1} parent=1 // pred_check
      %p79 = pneg %p78
    $region23: #{tpu_custom_call.1} parent=1 // pred_check_branch
      %81 = sbr.rel (%p79) target = $region25
    $region24: #{tpu_custom_call.1} parent=1 // pred_region
      %v82 = vld [vmem:[#allocation7] ss:$8 sm:$0xf]
      %v83 = vld [vmem:[#allocation7] ss:$8 sm:$0xf0]
      %v84 = vor.u32 %v82, %v83
      %v87 = vcombine.high %v72, %v72
      %v89 = vunpack.c.l.s4 1983009808
      %v90 = vunpack.c.0.s8 %v89
      %v91 = vlaneseq
      %v92 = vshrl.u32 %v91, 7
      %v93 = vsub.s32 %v90, %v92
      %v94 = vrot.slane %v72, %v93
      %v96 = vunpack.c.l.s4 1983009808
      %v97 = vunpack.c.0.s8 %v96
      %v98 = vlaneseq
      %v99 = vshrl.u32 %v98, 7
      %v100 = vsub.s32 %v97, %v99
      %v101 = vrot.slane %v87, %v100
      %v102 = vcombine.high %v94, %v94
      %v103 = vcombine.high %v101, %v101
      %v104 = vcombine.high %v73, %v73
      %v106 = vunpack.c.l.s4 1983009808
      %v107 = vunpack.c.0.s8 %v106
      %v108 = vlaneseq
      %v109 = vshrl.u32 %v108, 7
      %v110 = vsub.s32 %v107, %v109
      %v111 = vrot.slane %v73, %v110
      %v113 = vunpack.c.l.s4 1983009808
      %v114 = vunpack.c.0.s8 %v113
      %v115 = vlaneseq
      %v116 = vshrl.u32 %v115, 7
      %v117 = vsub.s32 %v114, %v116
      %v118 = vrot.slane %v104, %v117
      %v119 = vcombine.high %v111, %v111
      %v120 = vcombine.high %v118, %v118
      %vm129 = vcmask 1041408
      %v130 = vsel %vm129, %v94, 0.0
      %v131 = vrot.slane %v130, 4
      %v132 = vadd.f32 %v130, %v131
      %v133 = vrot.slane %v132, 2
      %v134 = vadd.f32 %v132, %v133
      %v135 = vrot.slane %v134, 1
      %v136 = vadd.f32 %v134, %v135
      %v137 = vsel %vm129, %v102, 0.0
      %v138 = vrot.slane %v137, 4
      %v139 = vadd.f32 %v137, %v138
      %v140 = vrot.slane %v139, 2
      %v141 = vadd.f32 %v139, %v140
      %v142 = vrot.slane %v141, 1
      %v143 = vadd.f32 %v141, %v142
      %v144 = vsel %vm129, %v101, 0.0
      %v145 = vrot.slane %v144, 4
      %v146 = vadd.f32 %v144, %v145
      %v147 = vrot.slane %v146, 2
      %v148 = vadd.f32 %v146, %v147
      %v149 = vrot.slane %v148, 1
      %v150 = vadd.f32 %v148, %v149
      %v151 = vsel %vm129, %v103, 0.0
      %v152 = vrot.slane %v151, 4
      %v153 = vadd.f32 %v151, %v152
      %v154 = vrot.slane %v153, 2
      %v155 = vadd.f32 %v153, %v154
      %v156 = vrot.slane %v155, 1
      %v157 = vadd.f32 %v155, %v156
      %v158 = vsel %vm129, %v111, 0.0
      %v159 = vrot.slane %v158, 4
      %v160 = vadd.f32 %v158, %v159
      %v161 = vrot.slane %v160, 2
      %v162 = vadd.f32 %v160, %v161
      %v163 = vrot.slane %v162, 1
      %v164 = vadd.f32 %v162, %v163
      %v165 = vsel %vm129, %v119, 0.0
      %v166 = vrot.slane %v165, 4
      %v167 = vadd.f32 %v165, %v166
      %v168 = vrot.slane %v167, 2
      %v169 = vadd.f32 %v167, %v168
      %v170 = vrot.slane %v169, 1
      %v171 = vadd.f32 %v169, %v170
      %v172 = vsel %vm129, %v118, 0.0
      %v173 = vrot.slane %v172, 4
      %v174 = vadd.f32 %v172, %v173
      %v175 = vrot.slane %v174, 2
      %v176 = vadd.f32 %v174, %v175
      %v177 = vrot.slane %v176, 1
      %v178 = vadd.f32 %v176, %v177
      %v179 = vsel %vm129, %v120, 0.0
      %v180 = vrot.slane %v179, 4
      %v181 = vadd.f32 %v179, %v180
      %v182 = vrot.slane %v181, 2
      %v183 = vadd.f32 %v181, %v182
      %v184 = vrot.slane %v183, 1
      %v185 = vadd.f32 %v183, %v184
      %v194 = vcombine.low %v136, %v143
      %v195 = vcombine.low %v150, %v157
      %v196 = vcombine.low %v164, %v171
      %v197 = vcombine.low %v178, %v185
      %v199 = vunpack.c.l.s4 1966171168
      %v200 = vunpack.c.0.s8 %v199
      %v201 = vlaneseq
      %v202 = vshrl.u32 %v201, 7
      %v203 = vsub.s32 %v200, %v202
      %v204 = vrot.slane %v194, %v203
      %v206 = vunpack.c.l.s4 1966171168
      %v207 = vunpack.c.0.s8 %v206
      %v208 = vlaneseq
      %v209 = vshrl.u32 %v208, 7
      %v210 = vsub.s32 %v207, %v209
      %v211 = vrot.slane %v195, %v210
      %v213 = vunpack.c.l.s4 1966171168
      %v214 = vunpack.c.0.s8 %v213
      %v215 = vlaneseq
      %v216 = vshrl.u32 %v215, 7
      %v217 = vsub.s32 %v214, %v216
      %v218 = vrot.slane %v196, %v217
      %v220 = vunpack.c.l.s4 1966171168
      %v221 = vunpack.c.0.s8 %v220
      %v222 = vlaneseq
      %v223 = vshrl.u32 %v222, 7
      %v224 = vsub.s32 %v221, %v223
      %v225 = vrot.slane %v197, %v224
      %v226 = vcombine.low %v204, %v211
      %v227 = vcombine.low %v218, %v225
      %v229 = vunpack.c.l.s4 1966171168
      %v230 = vunpack.c.0.s8 %v229
      %v231 = vlaneseq
      %v232 = vshrl.u32 %v231, 7
      %v233 = vsub.s32 %v230, %v232
      %v234 = vrot.slane %v226, %v233
      %v236 = vunpack.c.l.s4 1966171168
      %v237 = vunpack.c.0.s8 %v236
      %v238 = vlaneseq
      %v239 = vshrl.u32 %v238, 7
      %v240 = vsub.s32 %v237, %v239
      %v241 = vrot.slane %v227, %v240
      %v242 = vcombine.low %v234, %v241
      %v244 = vadd.f32 %v84, %v242
      %245 = vst [vmem:[#allocation7] ss:$8 sm:$0xf] %v244
      %246 = vst [vmem:[#allocation7] ss:$8 sm:$0xf0] %v244
    $region25: #{tpu_custom_call.1} parent=1 // pred_fallthru
      _
    // Predicated region
    $region26: #{tpu_custom_call.1} parent=1 // pred_check
      %p247 = pneg %p77
    $region27: #{tpu_custom_call.1} parent=1 // pred_check_branch
      %249 = sbr.rel (%p247) target = $region29
    $region28: #{tpu_custom_call.1} parent=1 // pred_region
      %v250 = vlaneseq
      %v251 = vshrl.u32 %v250, 7
      %v252 = vstv %s75
      %v253 = vadd.s32 %v252, %v251
      %vm254 = vcmp.lt.s32.totalorder %v253, 2
      %v255 = vld [vmem:[#allocation7] ss:$8 sm:$0xf]
      %v256 = vld [vmem:[#allocation7] ss:$8 sm:$0xf0]
      %v257 = vor.u32 %v255, %v256
      %v260 = vcombine.high %v72, %v72
      %v262 = vunpack.c.l.s4 1983009808
      %v263 = vunpack.c.0.s8 %v262
      %v264 = vlaneseq
      %v265 = vshrl.u32 %v264, 7
      %v266 = vsub.s32 %v263, %v265
      %v267 = vrot.slane %v72, %v266
      %v269 = vunpack.c.l.s4 1983009808
      %v270 = vunpack.c.0.s8 %v269
      %v271 = vlaneseq
      %v272 = vshrl.u32 %v271, 7
      %v273 = vsub.s32 %v270, %v272
      %v274 = vrot.slane %v260, %v273
      %v275 = vcombine.high %v267, %v267
      %v276 = vcombine.high %v274, %v274
      %v277 = vcombine.high %v73, %v73
      %v279 = vunpack.c.l.s4 1983009808
      %v280 = vunpack.c.0.s8 %v279
      %v281 = vlaneseq
      %v282 = vshrl.u32 %v281, 7
      %v283 = vsub.s32 %v280, %v282
      %v284 = vrot.slane %v73, %v283
      %v286 = vunpack.c.l.s4 1983009808
      %v287 = vunpack.c.0.s8 %v286
      %v288 = vlaneseq
      %v289 = vshrl.u32 %v288, 7
      %v290 = vsub.s32 %v287, %v289
      %v291 = vrot.slane %v277, %v290
      %v292 = vcombine.high %v284, %v284
      %v293 = vcombine.high %v291, %v291
      %v302 = vsel %vm254, %v267, 0.0
      %v303 = vsel %vm254, %v275, 0.0
      %v304 = vsel %vm254, %v274, 0.0
      %v305 = vsel %vm254, %v276, 0.0
      %v306 = vsel %vm254, %v284, 0.0
      %v307 = vsel %vm254, %v292, 0.0
      %v308 = vsel %vm254, %v291, 0.0
      %v309 = vsel %vm254, %v293, 0.0
      %vm310 = vcmask 1041408
      %v311 = vsel %vm310, %v302, 0.0
      %v312 = vrot.slane %v311, 4
      %v313 = vadd.f32 %v311, %v312
      %v314 = vrot.slane %v313, 2
      %v315 = vadd.f32 %v313, %v314
      %v316 = vrot.slane %v315, 1
      %v317 = vadd.f32 %v315, %v316
      %v318 = vsel %vm310, %v303, 0.0
      %v319 = vrot.slane %v318, 4
      %v320 = vadd.f32 %v318, %v319
      %v321 = vrot.slane %v320, 2
      %v322 = vadd.f32 %v320, %v321
      %v323 = vrot.slane %v322, 1
      %v324 = vadd.f32 %v322, %v323
      %v325 = vsel %vm310, %v304, 0.0
      %v326 = vrot.slane %v325, 4
      %v327 = vadd.f32 %v325, %v326
      %v328 = vrot.slane %v327, 2
      %v329 = vadd.f32 %v327, %v328
      %v330 = vrot.slane %v329, 1
      %v331 = vadd.f32 %v329, %v330
      %v332 = vsel %vm310, %v305, 0.0
      %v333 = vrot.slane %v332, 4
      %v334 = vadd.f32 %v332, %v333
      %v335 = vrot.slane %v334, 2
      %v336 = vadd.f32 %v334, %v335
      %v337 = vrot.slane %v336, 1
      %v338 = vadd.f32 %v336, %v337
      %v339 = vsel %vm310, %v306, 0.0
      %v340 = vrot.slane %v339, 4
      %v341 = vadd.f32 %v339, %v340
      %v342 = vrot.slane %v341, 2
      %v343 = vadd.f32 %v341, %v342
      %v344 = vrot.slane %v343, 1
      %v345 = vadd.f32 %v343, %v344
      %v346 = vsel %vm310, %v307, 0.0
      %v347 = vrot.slane %v346, 4
      %v348 = vadd.f32 %v346, %v347
      %v349 = vrot.slane %v348, 2
      %v350 = vadd.f32 %v348, %v349
      %v351 = vrot.slane %v350, 1
      %v352 = vadd.f32 %v350, %v351
      %v353 = vsel %vm310, %v308, 0.0
      %v354 = vrot.slane %v353, 4
      %v355 = vadd.f32 %v353, %v354
      %v356 = vrot.slane %v355, 2
      %v357 = vadd.f32 %v355, %v356
      %v358 = vrot.slane %v357, 1
      %v359 = vadd.f32 %v357, %v358
      %v360 = vsel %vm310, %v309, 0.0
      %v361 = vrot.slane %v360, 4
      %v362 = vadd.f32 %v360, %v361
      %v363 = vrot.slane %v362, 2
      %v364 = vadd.f32 %v362, %v363
      %v365 = vrot.slane %v364, 1
      %v366 = vadd.f32 %v364, %v365
      %v375 = vcombine.low %v317, %v324
      %v376 = vcombine.low %v331, %v338
      %v377 = vcombine.low %v345, %v352
      %v378 = vcombine.low %v359, %v366
      %v380 = vunpack.c.l.s4 1966171168
      %v381 = vunpack.c.0.s8 %v380
      %v382 = vlaneseq
      %v383 = vshrl.u32 %v382, 7
      %v384 = vsub.s32 %v381, %v383
      %v385 = vrot.slane %v375, %v384
      %v387 = vunpack.c.l.s4 1966171168
      %v388 = vunpack.c.0.s8 %v387
      %v389 = vlaneseq
      %v390 = vshrl.u32 %v389, 7
      %v391 = vsub.s32 %v388, %v390
      %v392 = vrot.slane %v376, %v391
      %v394 = vunpack.c.l.s4 1966171168
      %v395 = vunpack.c.0.s8 %v394
      %v396 = vlaneseq
      %v397 = vshrl.u32 %v396, 7
      %v398 = vsub.s32 %v395, %v397
      %v399 = vrot.slane %v377, %v398
      %v401 = vunpack.c.l.s4 1966171168
      %v402 = vunpack.c.0.s8 %v401
      %v403 = vlaneseq
      %v404 = vshrl.u32 %v403, 7
      %v405 = vsub.s32 %v402, %v404
      %v406 = vrot.slane %v378, %v405
      %v407 = vcombine.low %v385, %v392
      %v408 = vcombine.low %v399, %v406
      %v410 = vunpack.c.l.s4 1966171168
      %v411 = vunpack.c.0.s8 %v410
      %v412 = vlaneseq
      %v413 = vshrl.u32 %v412, 7
      %v414 = vsub.s32 %v411, %v413
      %v415 = vrot.slane %v407, %v414
      %v417 = vunpack.c.l.s4 1966171168
      %v418 = vunpack.c.0.s8 %v417
      %v419 = vlaneseq
      %v420 = vshrl.u32 %v419, 7
      %v421 = vsub.s32 %v418, %v420
      %v422 = vrot.slane %v408, %v421
      %v423 = vcombine.low %v415, %v422
      %v425 = vadd.f32 %v257, %v423
      %426 = vst [vmem:[#allocation7] ss:$8 sm:$0xf] %v425
      %427 = vst [vmem:[#allocation7] ss:$8 sm:$0xf0] %v425
    $region29: #{tpu_custom_call.1} parent=1 // pred_fallthru
      _
    // Predicated region
    $region30: #{tpu_custom_call.1} parent=1 // pred_check
      _
    $region31: #{tpu_custom_call.1} parent=1 // pred_check_branch
      %429 = sbr.rel (0) target = $region33
    $region32: #{tpu_custom_call.1} parent=1 // pred_region
      %s431 = ssub.s32 1024, 1024
      %432 = vsyncadd [#allocation4], %s431
      %s434 = sshll.u32 [#allocation7], 4
      %s435 = int_to_ptr.vmem [resolvable:$true] %s434
      %437 = dma.vmem_to_hbm [thread:$0]  %s435, 1024, %s2, [#allocation4]
    $region33: #{tpu_custom_call.1} parent=1 // pred_fallthru
      _
    // Predicated region
    $region34: #{tpu_custom_call.1} parent=1 // pred_check
      _
    $region35: #{tpu_custom_call.1} parent=1 // pred_check_branch
      %439 = sbr.rel (0) target = $region37
    $region36: #{tpu_custom_call.1} parent=1 // pred_region
      %440 = dma.done [#allocation4], 1024
    $region37: #{tpu_custom_call.1} parent=1 // pred_fallthru
      _
    %441 = vsyncpa [#allocation3], 1
    %442 = vsyncpa [#allocation6], 1
    %443 = vsyncpa [#allocation4], 1

</llo_original>
